<compile_context>
chip_gen: v6e
topology: v6e:2x2x1
jax: 0.10.0
libtpu: 0.0.40
codegen_flags: <defaults>
</compile_context>

<pallas_src>
import functools

import jax
import jax.numpy as jnp
from jax.experimental import pallas as pl
from jax.experimental.pallas import tpu as pltpu


def _yolo_loss_kernel(pred_ref, aux_ref, out_ref,
                      noobj_sum, noobj_cnt, obj_sum, obj_cnt, box_sum, ce_sum,
                      *, n_rows):
    i = pl.program_id(0)

    @pl.when(i == 0)
    def _init():
        for r in (noobj_sum, noobj_cnt, obj_sum, obj_cnt, box_sum, ce_sum):
            r[...] = jnp.zeros_like(r)

    p = pred_ref[...].astype(jnp.float32)   # (F, TS, 128)
    t = aux_ref[...].astype(jnp.float32)    # (8, TS, 128): t0,x,y,w,h,cls,aw,ah

    ts = p.shape[1]
    rows_per_tile = ts * 128

    # Row validity mask (handles the padded tail; no wrapper-side target hack).
    sub = jax.lax.broadcasted_iota(jnp.int32, (ts, 128), 0)
    lane = jax.lax.broadcasted_iota(jnp.int32, (ts, 128), 1)
    row_id = i * rows_per_tile + sub * 128 + lane
    valid = row_id < n_rows

    t0 = t[0]
    obj = jnp.logical_and(t0 == 1.0, valid)
    noobj = jnp.logical_and(t0 == 0.0, valid)

    # ---- objectness logit: share exp(-|x|) between BCE and sigmoid ----
    x = p[0]
    e = jnp.exp(-jnp.abs(x))
    one_plus_e = 1.0 + e
    inv_1pe = pl.reciprocal(one_plus_e, approx=True)
    s0 = jnp.where(x >= 0.0, inv_1pe, e * inv_1pe)          # sigmoid(x)
    bce = jnp.maximum(x, 0.0) - x * t0 + jnp.log(one_plus_e)

    noobj_sum[...] += jnp.where(noobj, bce, 0.0)
    noobj_cnt[...] += noobj.astype(jnp.float32)

    # ---- decoded box predictions + midpoint IoU against target boxes ----
    aw, ah = t[6], t[7]
    bx = jax.nn.sigmoid(p[1])
    by = jax.nn.sigmoid(p[2])
    bw = jnp.exp(p[3]) * aw
    bh = jnp.exp(p[4]) * ah
    tx, ty, tw, th = t[1], t[2], t[3], t[4]

    b1x1, b1y1 = bx - bw * 0.5, by - bh * 0.5
    b1x2, b1y2 = bx + bw * 0.5, by + bh * 0.5
    b2x1, b2y1 = tx - tw * 0.5, ty - th * 0.5
    b2x2, b2y2 = tx + tw * 0.5, ty + th * 0.5
    iw = jnp.maximum(jnp.minimum(b1x2, b2x2) - jnp.maximum(b1x1, b2x1), 0.0)
    ih = jnp.maximum(jnp.minimum(b1y2, b2y2) - jnp.maximum(b1y1, b2y1), 0.0)
    inter = iw * ih
    area1 = jnp.abs((b1x2 - b1x1) * (b1y2 - b1y1))
    area2 = jnp.abs((b2x2 - b2x1) * (b2y2 - b2y1))
    iou = inter * pl.reciprocal(area1 + area2 - inter + 1e-6, approx=True)

    # ---- object loss: MSE(sigmoid(obj logit), iou * objness), mean over obj ----
    obj_sum[...] += jnp.where(obj, (s0 - iou * t0) ** 2, 0.0)
    obj_cnt[...] += obj.astype(jnp.float32)

    # ---- box loss: MSE over 4 coords, target w/h in log-anchor space ----
    ltw = jnp.log(1e-16 + tw * pl.reciprocal(aw, approx=True))
    lth = jnp.log(1e-16 + th * pl.reciprocal(ah, approx=True))
    box_se = ((bx - tx) ** 2 + (by - ty) ** 2
              + (p[3] - ltw) ** 2 + (p[4] - lth) ** 2)
    box_sum[...] += jnp.where(obj, box_se, 0.0)

    # ---- class loss: softmax CE over the (leading) channel axis: pure VPU ----
    logits = p[5:]                                  # (C, TS, 128)
    m = jnp.max(logits, axis=0)                     # vreg-wise maxes, no XLU
    z = jnp.exp(logits - m)
    lse = m + jnp.log(jnp.sum(z, axis=0))
    cls = t[5].astype(jnp.int32)
    cidx = jax.lax.broadcasted_iota(jnp.int32, logits.shape, 0)
    picked = jnp.sum(jnp.where(cidx == cls, logits, 0.0), axis=0)
    ce_sum[...] += jnp.where(obj, lse - picked, 0.0)

    # ---- finalize: reduce the wide accumulators to the scalar loss ONCE ----
    @pl.when(i == pl.num_programs(0) - 1)
    def _fin():
        def tot(ref):
            v = jnp.sum(ref[...], axis=1, keepdims=True)
            return jnp.sum(v, axis=0, keepdims=True)        # (1, 1)
        n_no = tot(noobj_cnt)
        n_ob = tot(obj_cnt)
        no_object_loss = tot(noobj_sum) / n_no
        object_loss = tot(obj_sum) / n_ob
        box_loss = tot(box_sum) / (4.0 * n_ob)
        class_loss = tot(ce_sum) / n_ob
        out_ref[...] = (10.0 * box_loss + 1.0 * object_loss
                        + 10.0 * no_object_loss + 1.0 * class_loss)


@functools.partial(jax.jit, static_argnames=("block_rows",))
def yolo_loss_pallas(predictions, target, anchors, *, block_rows=2048):
    B, A, S1, S2, F = predictions.shape
    N = B * A * S1 * S2

    # Row-tile size: big tiles amortize per-step overhead; clamp for tiny inputs.
    ns_total = pl.cdiv(N, 128)
    ts = max(1, block_rows // 128)
    if ts >= ns_total:
        ts = ns_total                  # one block covers the full (padded) array
    else:
        ts = max(8, (ts // 8) * 8)     # multi-tile: sublane dim multiple of 8
    rows_per_tile = ts * 128
    NP = pl.cdiv(N, rows_per_tile) * rows_per_tile
    NS = NP // 128
    pad = NP - N

    # Channels-first, lane-dense relayout (one fused transpose/pad copy).
    # Predictions stay in their native dtype; the kernel upcasts on load.
    p_t = jnp.transpose(predictions.reshape(N, F), (1, 0))          # (F, N)
    t2 = target.reshape(N, 6).astype(jnp.float32)
    anc_rows = jnp.broadcast_to(
        anchors.reshape(1, A, 1, 1, 2).astype(jnp.float32),
        (B, A, S1, S2, 2)).reshape(N, 2)
    aux = jnp.transpose(jnp.concatenate([t2, anc_rows], axis=-1), (1, 0))  # (8, N)
    if pad:
        p_t = jnp.pad(p_t, ((0, 0), (0, pad)))
        aux = jnp.pad(aux, ((0, 0), (0, pad)))
    p_t = p_t.reshape(F, NS, 128)
    aux = aux.reshape(8, NS, 128)

    out = pl.pallas_call(
        functools.partial(_yolo_loss_kernel, n_rows=N),
        out_shape=jax.ShapeDtypeStruct((1, 1), jnp.float32),
        grid_spec=pltpu.PrefetchScalarGridSpec(
            num_scalar_prefetch=0,
            grid=(NP // rows_per_tile,),
            in_specs=[
                pl.BlockSpec((F, ts, 128), lambda i: (0, i, 0)),
                pl.BlockSpec((8, ts, 128), lambda i: (0, i, 0)),
            ],
            out_specs=pl.BlockSpec((1, 1), lambda i: (0, 0)),
            scratch_shapes=[pltpu.VMEM((ts, 128), jnp.float32)
                            for _ in range(6)],
        ),
        compiler_params=pltpu.CompilerParams(
            dimension_semantics=("arbitrary",),
            vmem_limit_bytes=32 * 1024 * 1024,
        ),
    )(p_t, aux)
    return out[0, 0]


def yolo_loss_ref(pred, tgt, anchors):
    """Plain-JAX reference mirroring the PyTorch YoloLoss forward."""
    obj = tgt[..., 0] == 1.0
    noobj = tgt[..., 0] == 0.0
    objf = obj.astype(jnp.float32)
    noobjf = noobj.astype(jnp.float32)

    x = pred[..., 0]
    y = tgt[..., 0]
    bce = jnp.maximum(x, 0.0) - x * y + jnp.log(1.0 + jnp.exp(-jnp.abs(x)))
    no_object_loss = jnp.sum(jnp.where(noobj, bce, 0.0)) / jnp.sum(noobjf)

    anc = anchors.reshape(1, 3, 1, 1, 2)
    bx = jax.nn.sigmoid(pred[..., 1])
    by = jax.nn.sigmoid(pred[..., 2])
    bw = jnp.exp(pred[..., 3]) * anc[..., 0]
    bh = jnp.exp(pred[..., 4]) * anc[..., 1]
    tx, ty, tw, th = tgt[..., 1], tgt[..., 2], tgt[..., 3], tgt[..., 4]

    b1x1, b1y1, b1x2, b1y2 = bx - bw / 2, by - bh / 2, bx + bw / 2, by + bh / 2
    b2x1, b2y1, b2x2, b2y2 = tx - tw / 2, ty - th / 2, tx + tw / 2, ty + th / 2
    iw = jnp.maximum(jnp.minimum(b1x2, b2x2) - jnp.maximum(b1x1, b2x1), 0.0)
    ih = jnp.maximum(jnp.minimum(b1y2, b2y2) - jnp.maximum(b1y1, b2y1), 0.0)
    inter = iw * ih
    a1 = jnp.abs((b1x2 - b1x1) * (b1y2 - b1y1))
    a2 = jnp.abs((b2x2 - b2x1) * (b2y2 - b2y1))
    iou = inter / (a1 + a2 - inter + 1e-6)

    s0 = jax.nn.sigmoid(pred[..., 0])
    object_loss = jnp.sum(jnp.where(obj, (s0 - iou * tgt[..., 0]) ** 2, 0.0)) / jnp.sum(objf)

    ltw = jnp.log(1e-16 + tw / anc[..., 0])
    lth = jnp.log(1e-16 + th / anc[..., 1])
    box_se = (bx - tx) ** 2 + (by - ty) ** 2 + (pred[..., 3] - ltw) ** 2 + (pred[..., 4] - lth) ** 2
    box_loss = jnp.sum(jnp.where(obj, box_se, 0.0)) / (4.0 * jnp.sum(objf))

    logits = pred[..., 5:]
    lse = jax.nn.logsumexp(logits, axis=-1)
    cls = tgt[..., 5].astype(jnp.int32)
    picked = jnp.take_along_axis(logits, cls[..., None], axis=-1)[..., 0]
    class_loss = jnp.sum(jnp.where(obj, lse - picked, 0.0)) / jnp.sum(objf)

    return 10.0 * box_loss + 1.0 * object_loss + 10.0 * no_object_loss + 1.0 * class_loss


if __name__ == "__main__":
    key = jax.random.PRNGKey(0)
    B, A, S, C = 2, 3, 8, 4          # small synthetic shapes
    F = 5 + C
    k1, k2, k3, k4, k5 = jax.random.split(key, 5)

    predictions = jax.random.normal(k1, (B, A, S, S, F), jnp.float32)
    obj_mask = (jax.random.uniform(k2, (B, A, S, S)) < 0.3).astype(jnp.float32)
    # guarantee at least one obj and one noobj cell
    obj_mask = obj_mask.at[0, 0, 0, 0].set(1.0).at[0, 0, 0, 1].set(0.0)
    xy = jax.random.uniform(k3, (B, A, S, S, 2), minval=0.05, maxval=0.95)
    wh = jax.random.uniform(k4, (B, A, S, S, 2), minval=0.5, maxval=2.0)
    cls = jax.random.randint(k5, (B, A, S, S), 0, C).astype(jnp.float32)
    target = jnp.concatenate([obj_mask[..., None], xy, wh, cls[..., None]], axis=-1)
    anchors = jnp.array([[1.0, 1.0], [2.0, 1.5], [0.5, 0.75]], jnp.float32)

    loss = yolo_loss_pallas(predictions, target, anchors)
    jax.block_until_ready(loss)

    ref = yolo_loss_ref(predictions, target, anchors)
    assert bool(jnp.isfinite(loss)), loss
    assert abs(float(loss) - float(ref)) <= 1e-2 * max(1.0, abs(float(ref))), (float(loss), float(ref))
    print("KERNEL_OK")
</pallas_src>

<mosaic_0001>
module attributes {stable_mosaic.version = 11 : i64} {
  func.func @_yolo_loss_kernel(%arg0: i32, %arg1: memref<9x3x128xf32, #tpu.memory_space<vmem>>, %arg2: memref<8x3x128xf32, #tpu.memory_space<vmem>>, %arg3: memref<1x1xf32, #tpu.memory_space<vmem>>, %arg4: memref<3x128xf32, #tpu.memory_space<vmem>>, %arg5: memref<3x128xf32, #tpu.memory_space<vmem>>, %arg6: memref<3x128xf32, #tpu.memory_space<vmem>>, %arg7: memref<3x128xf32, #tpu.memory_space<vmem>>, %arg8: memref<3x128xf32, #tpu.memory_space<vmem>>, %arg9: memref<3x128xf32, #tpu.memory_space<vmem>>) attributes {dimension_semantics = [#tpu.dimension_semantics<arbitrary>], iteration_bounds = array<i64: 1>, scalar_prefetch = 0 : i64, scratch_operands = 6 : i64, tpu.core_type = #tpu.core_type<tc>, window_params = [{transform_indices = @transform_0, window_bounds = array<i64: 9, 3, 128>}, {transform_indices = @transform_1, window_bounds = array<i64: 8, 3, 128>}, {pipeline_mode = #tpu.pipeline_mode<synchronous>, transform_indices = @transform_2, window_bounds = array<i64: 1, 1>}]} {
    %c0_i32 = arith.constant 0 : i32
    %0 = arith.cmpi eq, %arg0, %c0_i32 : i32
    %1 = arith.extui %0 : i1 to i32
    %c0_i32_0 = arith.constant 0 : i32
    %2 = arith.cmpi ne, %1, %c0_i32_0 : i32
    scf.if %2 {
      %cst_61 = arith.constant 0.000000e+00 : f32
      %206 = vector.broadcast %cst_61 : f32 to vector<3x128xf32>
      %c0_62 = arith.constant 0 : index
      %c0_63 = arith.constant 0 : index
      %207 = vector.load %arg4[%c0_62, %c0_63] : memref<3x128xf32, #tpu.memory_space<vmem>>, vector<3x128xf32>
      tpu.vector_store %arg4[%c0_62, %c0_63], %206 {strides = array<i32>} : memref<3x128xf32, #tpu.memory_space<vmem>>, vector<3x128xf32>,
      %cst_64 = arith.constant 0.000000e+00 : f32
      %208 = vector.broadcast %cst_64 : f32 to vector<3x128xf32>
      %c0_65 = arith.constant 0 : index
      %c0_66 = arith.constant 0 : index
      %209 = vector.load %arg5[%c0_65, %c0_66] : memref<3x128xf32, #tpu.memory_space<vmem>>, vector<3x128xf32>
      tpu.vector_store %arg5[%c0_65, %c0_66], %208 {strides = array<i32>} : memref<3x128xf32, #tpu.memory_space<vmem>>, vector<3x128xf32>,
      %cst_67 = arith.constant 0.000000e+00 : f32
      %210 = vector.broadcast %cst_67 : f32 to vector<3x128xf32>
      %c0_68 = arith.constant 0 : index
      %c0_69 = arith.constant 0 : index
      %211 = vector.load %arg6[%c0_68, %c0_69] : memref<3x128xf32, #tpu.memory_space<vmem>>, vector<3x128xf32>
      tpu.vector_store %arg6[%c0_68, %c0_69], %210 {strides = array<i32>} : memref<3x128xf32, #tpu.memory_space<vmem>>, vector<3x128xf32>,
      %cst_70 = arith.constant 0.000000e+00 : f32
      %212 = vector.broadcast %cst_70 : f32 to vector<3x128xf32>
      %c0_71 = arith.constant 0 : index
      %c0_72 = arith.constant 0 : index
      %213 = vector.load %arg7[%c0_71, %c0_72] : memref<3x128xf32, #tpu.memory_space<vmem>>, vector<3x128xf32>
      tpu.vector_store %arg7[%c0_71, %c0_72], %212 {strides = array<i32>} : memref<3x128xf32, #tpu.memory_space<vmem>>, vector<3x128xf32>,
      %cst_73 = arith.constant 0.000000e+00 : f32
      %214 = vector.broadcast %cst_73 : f32 to vector<3x128xf32>
      %c0_74 = arith.constant 0 : index
      %c0_75 = arith.constant 0 : index
      %215 = vector.load %arg8[%c0_74, %c0_75] : memref<3x128xf32, #tpu.memory_space<vmem>>, vector<3x128xf32>
      tpu.vector_store %arg8[%c0_74, %c0_75], %214 {strides = array<i32>} : memref<3x128xf32, #tpu.memory_space<vmem>>, vector<3x128xf32>,
      %cst_76 = arith.constant 0.000000e+00 : f32
      %216 = vector.broadcast %cst_76 : f32 to vector<3x128xf32>
      %c0_77 = arith.constant 0 : index
      %c0_78 = arith.constant 0 : index
      %217 = vector.load %arg9[%c0_77, %c0_78] : memref<3x128xf32, #tpu.memory_space<vmem>>, vector<3x128xf32>
      tpu.vector_store %arg9[%c0_77, %c0_78], %216 {strides = array<i32>} : memref<3x128xf32, #tpu.memory_space<vmem>>, vector<3x128xf32>,
    } else {
    }
    %c0 = arith.constant 0 : index
    %c0_1 = arith.constant 0 : index
    %c0_2 = arith.constant 0 : index
    %3 = vector.load %arg1[%c0, %c0_1, %c0_2] : memref<9x3x128xf32, #tpu.memory_space<vmem>>, vector<9x3x128xf32>
    %c0_3 = arith.constant 0 : index
    %c0_4 = arith.constant 0 : index
    %c0_5 = arith.constant 0 : index
    %4 = vector.load %arg2[%c0_3, %c0_4, %c0_5] : memref<8x3x128xf32, #tpu.memory_space<vmem>>, vector<8x3x128xf32>
    %5 = tpu.iota {dimensions = array<i32: 0>} : vector<3x128xi32>
    %6 = tpu.iota {dimensions = array<i32: 1>} : vector<3x128xi32>
    %c384_i32 = arith.constant 384 : i32
    %7 = arith.muli %arg0, %c384_i32 : i32
    %c128_i32 = arith.constant 128 : i32
    %8 = vector.broadcast %c128_i32 : i32 to vector<3x128xi32>
    %9 = arith.muli %5, %8 : vector<3x128xi32>
    %10 = vector.broadcast %7 : i32 to vector<3x128xi32>
    %11 = arith.addi %10, %9 : vector<3x128xi32>
    %12 = arith.addi %11, %6 : vector<3x128xi32>
    %c384_i32_6 = arith.constant 384 : i32
    %13 = vector.broadcast %c384_i32_6 : i32 to vector<3x128xi32>
    %14 = arith.cmpi slt, %12, %13 : vector<3x128xi32>
    %15 = vector.extract_strided_slice %4 {offsets = [0, 0, 0], sizes = [1, 3, 128], strides = [1, 1, 1]} : vector<8x3x128xf32> to vector<1x3x128xf32>
    %16 = vector.shape_cast %15 : vector<1x3x128xf32> to vector<3x128xf32>
    %cst = arith.constant 1.000000e+00 : f32
    %17 = vector.broadcast %cst : f32 to vector<3x128xf32>
    %18 = arith.cmpf oeq, %16, %17 : vector<3x128xf32>
    %19 = arith.andi %18, %14 : vector<3x128xi1>
    %cst_7 = arith.constant 0.000000e+00 : f32
    %20 = vector.broadcast %cst_7 : f32 to vector<3x128xf32>
    %21 = arith.cmpf oeq, %16, %20 : vector<3x128xf32>
    %22 = arith.andi %21, %14 : vector<3x128xi1>
    %23 = vector.extract_strided_slice %3 {offsets = [0, 0, 0], sizes = [1, 3, 128], strides = [1, 1, 1]} : vector<9x3x128xf32> to vector<1x3x128xf32>
    %24 = vector.shape_cast %23 : vector<1x3x128xf32> to vector<3x128xf32>
    %25 = math.absf %24 : vector<3x128xf32>
    %cst_8 = arith.constant 0.000000e+00 : f32
    %26 = vector.broadcast %cst_8 : f32 to vector<3x128xf32>
    %27 = arith.subf %26, %25 : vector<3x128xf32>
    %28 = math.exp %27 : vector<3x128xf32>
    %cst_9 = arith.constant 1.000000e+00 : f32
    %29 = vector.broadcast %cst_9 : f32 to vector<3x128xf32>
    %30 = arith.addf %29, %28 : vector<3x128xf32>
    %31 = tpu.reciprocal %30 {approx = true} : vector<3x128xf32> -> vector<3x128xf32>
    %cst_10 = arith.constant 0.000000e+00 : f32
    %32 = vector.broadcast %cst_10 : f32 to vector<3x128xf32>
    %33 = arith.cmpf oge, %24, %32 : vector<3x128xf32>
    %34 = arith.mulf %28, %31 : vector<3x128xf32>
    %35 = arith.select %33, %31, %34 : vector<3x128xi1>, vector<3x128xf32>
    %cst_11 = arith.constant 0.000000e+00 : f32
    %36 = vector.broadcast %cst_11 : f32 to vector<3x128xf32>
    %37 = arith.maximumf %24, %36 : vector<3x128xf32>
    %38 = arith.mulf %24, %16 : vector<3x128xf32>
    %39 = arith.subf %37, %38 : vector<3x128xf32>
    %40 = math.log %30 : vector<3x128xf32>
    %41 = arith.addf %39, %40 : vector<3x128xf32>
    %c0_12 = arith.constant 0 : index
    %c0_13 = arith.constant 0 : index
    %42 = vector.load %arg4[%c0_12, %c0_13] : memref<3x128xf32, #tpu.memory_space<vmem>>, vector<3x128xf32>
    %cst_14 = arith.constant 0.000000e+00 : f32
    %43 = vector.broadcast %cst_14 : f32 to vector<3x128xf32>
    %44 = arith.select %22, %41, %43 : vector<3x128xi1>, vector<3x128xf32>
    %45 = arith.addf %42, %44 : vector<3x128xf32>
    %c0_15 = arith.constant 0 : index
    %c0_16 = arith.constant 0 : index
    %46 = vector.load %arg4[%c0_15, %c0_16] : memref<3x128xf32, #tpu.memory_space<vmem>>, vector<3x128xf32>
    tpu.vector_store %arg4[%c0_15, %c0_16], %45 {strides = array<i32>} : memref<3x128xf32, #tpu.memory_space<vmem>>, vector<3x128xf32>,
    %c0_17 = arith.constant 0 : index
    %c0_18 = arith.constant 0 : index
    %47 = vector.load %arg5[%c0_17, %c0_18] : memref<3x128xf32, #tpu.memory_space<vmem>>, vector<3x128xf32>
    %48 = arith.extui %22 : vector<3x128xi1> to vector<3x128xi32>
    %49 = arith.sitofp %48 : vector<3x128xi32> to vector<3x128xf32>
    %50 = arith.addf %47, %49 : vector<3x128xf32>
    %c0_19 = arith.constant 0 : index
    %c0_20 = arith.constant 0 : index
    %51 = vector.load %arg5[%c0_19, %c0_20] : memref<3x128xf32, #tpu.memory_space<vmem>>, vector<3x128xf32>
    tpu.vector_store %arg5[%c0_19, %c0_20], %50 {strides = array<i32>} : memref<3x128xf32, #tpu.memory_space<vmem>>, vector<3x128xf32>,
    %52 = vector.extract_strided_slice %4 {offsets = [6, 0, 0], sizes = [1, 3, 128], strides = [1, 1, 1]} : vector<8x3x128xf32> to vector<1x3x128xf32>
    %53 = vector.shape_cast %52 : vector<1x3x128xf32> to vector<3x128xf32>
    %54 = vector.extract_strided_slice %4 {offsets = [7, 0, 0], sizes = [1, 3, 128], strides = [1, 1, 1]} : vector<8x3x128xf32> to vector<1x3x128xf32>
    %55 = vector.shape_cast %54 : vector<1x3x128xf32> to vector<3x128xf32>
    %56 = vector.extract_strided_slice %3 {offsets = [1, 0, 0], sizes = [1, 3, 128], strides = [1, 1, 1]} : vector<9x3x128xf32> to vector<1x3x128xf32>
    %57 = vector.shape_cast %56 : vector<1x3x128xf32> to vector<3x128xf32>
    %58 = arith.negf %57 : vector<3x128xf32>
    %59 = math.exp %58 : vector<3x128xf32>
    %cst_21 = arith.constant 1.000000e+00 : f32
    %60 = vector.broadcast %cst_21 : f32 to vector<3x128xf32>
    %61 = arith.addf %60, %59 : vector<3x128xf32>
    %62 = arith.divf %60, %61 : vector<3x128xf32>
    %63 = vector.extract_strided_slice %3 {offsets = [2, 0, 0], sizes = [1, 3, 128], strides = [1, 1, 1]} : vector<9x3x128xf32> to vector<1x3x128xf32>
    %64 = vector.shape_cast %63 : vector<1x3x128xf32> to vector<3x128xf32>
    %65 = arith.negf %64 : vector<3x128xf32>
    %66 = math.exp %65 : vector<3x128xf32>
    %cst_22 = arith.constant 1.000000e+00 : f32
    %67 = vector.broadcast %cst_22 : f32 to vector<3x128xf32>
    %68 = arith.addf %67, %66 : vector<3x128xf32>
    %69 = arith.divf %67, %68 : vector<3x128xf32>
    %70 = vector.extract_strided_slice %3 {offsets = [3, 0, 0], sizes = [1, 3, 128], strides = [1, 1, 1]} : vector<9x3x128xf32> to vector<1x3x128xf32>
    %71 = vector.shape_cast %70 : vector<1x3x128xf32> to vector<3x128xf32>
    %72 = math.exp %71 : vector<3x128xf32>
    %73 = arith.mulf %72, %53 : vector<3x128xf32>
    %74 = vector.extract_strided_slice %3 {offsets = [4, 0, 0], sizes = [1, 3, 128], strides = [1, 1, 1]} : vector<9x3x128xf32> to vector<1x3x128xf32>
    %75 = vector.shape_cast %74 : vector<1x3x128xf32> to vector<3x128xf32>
    %76 = math.exp %75 : vector<3x128xf32>
    %77 = arith.mulf %76, %55 : vector<3x128xf32>
    %78 = vector.extract_strided_slice %4 {offsets = [1, 0, 0], sizes = [1, 3, 128], strides = [1, 1, 1]} : vector<8x3x128xf32> to vector<1x3x128xf32>
    %79 = vector.shape_cast %78 : vector<1x3x128xf32> to vector<3x128xf32>
    %80 = vector.extract_strided_slice %4 {offsets = [2, 0, 0], sizes = [1, 3, 128], strides = [1, 1, 1]} : vector<8x3x128xf32> to vector<1x3x128xf32>
    %81 = vector.shape_cast %80 : vector<1x3x128xf32> to vector<3x128xf32>
    %82 = vector.extract_strided_slice %4 {offsets = [3, 0, 0], sizes = [1, 3, 128], strides = [1, 1, 1]} : vector<8x3x128xf32> to vector<1x3x128xf32>
    %83 = vector.shape_cast %82 : vector<1x3x128xf32> to vector<3x128xf32>
    %84 = vector.extract_strided_slice %4 {offsets = [4, 0, 0], sizes = [1, 3, 128], strides = [1, 1, 1]} : vector<8x3x128xf32> to vector<1x3x128xf32>
    %85 = vector.shape_cast %84 : vector<1x3x128xf32> to vector<3x128xf32>
    %cst_23 = arith.constant 5.000000e-01 : f32
    %86 = vector.broadcast %cst_23 : f32 to vector<3x128xf32>
    %87 = arith.mulf %73, %86 : vector<3x128xf32>
    %88 = arith.subf %62, %87 : vector<3x128xf32>
    %cst_24 = arith.constant 5.000000e-01 : f32
    %89 = vector.broadcast %cst_24 : f32 to vector<3x128xf32>
    %90 = arith.mulf %77, %89 : vector<3x128xf32>
    %91 = arith.subf %69, %90 : vector<3x128xf32>
    %cst_25 = arith.constant 5.000000e-01 : f32
    %92 = vector.broadcast %cst_25 : f32 to vector<3x128xf32>
    %93 = arith.mulf %73, %92 : vector<3x128xf32>
    %94 = arith.addf %62, %93 : vector<3x128xf32>
    %cst_26 = arith.constant 5.000000e-01 : f32
    %95 = vector.broadcast %cst_26 : f32 to vector<3x128xf32>
    %96 = arith.mulf %77, %95 : vector<3x128xf32>
    %97 = arith.addf %69, %96 : vector<3x128xf32>
    %cst_27 = arith.constant 5.000000e-01 : f32
    %98 = vector.broadcast %cst_27 : f32 to vector<3x128xf32>
    %99 = arith.mulf %83, %98 : vector<3x128xf32>
    %100 = arith.subf %79, %99 : vector<3x128xf32>
    %cst_28 = arith.constant 5.000000e-01 : f32
    %101 = vector.broadcast %cst_28 : f32 to vector<3x128xf32>
    %102 = arith.mulf %85, %101 : vector<3x128xf32>
    %103 = arith.subf %81, %102 : vector<3x128xf32>
    %cst_29 = arith.constant 5.000000e-01 : f32
    %104 = vector.broadcast %cst_29 : f32 to vector<3x128xf32>
    %105 = arith.mulf %83, %104 : vector<3x128xf32>
    %106 = arith.addf %79, %105 : vector<3x128xf32>
    %cst_30 = arith.constant 5.000000e-01 : f32
    %107 = vector.broadcast %cst_30 : f32 to vector<3x128xf32>
    %108 = arith.mulf %85, %107 : vector<3x128xf32>
    %109 = arith.addf %81, %108 : vector<3x128xf32>
    %110 = arith.minimumf %94, %106 : vector<3x128xf32>
    %111 = arith.maximumf %88, %100 : vector<3x128xf32>
    %112 = arith.subf %110, %111 : vector<3x128xf32>
    %cst_31 = arith.constant 0.000000e+00 : f32
    %113 = vector.broadcast %cst_31 : f32 to vector<3x128xf32>
    %114 = arith.maximumf %112, %113 : vector<3x128xf32>
    %115 = arith.minimumf %97, %109 : vector<3x128xf32>
    %116 = arith.maximumf %91, %103 : vector<3x128xf32>
    %117 = arith.subf %115, %116 : vector<3x128xf32>
    %cst_32 = arith.constant 0.000000e+00 : f32
    %118 = vector.broadcast %cst_32 : f32 to vector<3x128xf32>
    %119 = arith.maximumf %117, %118 : vector<3x128xf32>
    %120 = arith.mulf %114, %119 : vector<3x128xf32>
    %121 = arith.subf %94, %88 : vector<3x128xf32>
    %122 = arith.subf %97, %91 : vector<3x128xf32>
    %123 = arith.mulf %121, %122 : vector<3x128xf32>
    %124 = math.absf %123 : vector<3x128xf32>
    %125 = arith.subf %106, %100 : vector<3x128xf32>
    %126 = arith.subf %109, %103 : vector<3x128xf32>
    %127 = arith.mulf %125, %126 : vector<3x128xf32>
    %128 = math.absf %127 : vector<3x128xf32>
    %129 = arith.addf %124, %128 : vector<3x128xf32>
    %130 = arith.subf %129, %120 : vector<3x128xf32>
    %cst_33 = arith.constant 9.99999997E-7 : f32
    %131 = vector.broadcast %cst_33 : f32 to vector<3x128xf32>
    %132 = arith.addf %130, %131 : vector<3x128xf32>
    %133 = tpu.reciprocal %132 {approx = true} : vector<3x128xf32> -> vector<3x128xf32>
    %134 = arith.mulf %120, %133 : vector<3x128xf32>
    %c0_34 = arith.constant 0 : index
    %c0_35 = arith.constant 0 : index
    %135 = vector.load %arg6[%c0_34, %c0_35] : memref<3x128xf32, #tpu.memory_space<vmem>>, vector<3x128xf32>
    %136 = arith.mulf %134, %16 : vector<3x128xf32>
    %137 = arith.subf %35, %136 : vector<3x128xf32>
    %138 = arith.mulf %137, %137 : vector<3x128xf32>
    %cst_36 = arith.constant 0.000000e+00 : f32
    %139 = vector.broadcast %cst_36 : f32 to vector<3x128xf32>
    %140 = arith.select %19, %138, %139 : vector<3x128xi1>, vector<3x128xf32>
    %141 = arith.addf %135, %140 : vector<3x128xf32>
    %c0_37 = arith.constant 0 : index
    %c0_38 = arith.constant 0 : index
    %142 = vector.load %arg6[%c0_37, %c0_38] : memref<3x128xf32, #tpu.memory_space<vmem>>, vector<3x128xf32>
    tpu.vector_store %arg6[%c0_37, %c0_38], %141 {strides = array<i32>} : memref<3x128xf32, #tpu.memory_space<vmem>>, vector<3x128xf32>,
    %c0_39 = arith.constant 0 : index
    %c0_40 = arith.constant 0 : index
    %143 = vector.load %arg7[%c0_39, %c0_40] : memref<3x128xf32, #tpu.memory_space<vmem>>, vector<3x128xf32>
    %144 = arith.extui %19 : vector<3x128xi1> to vector<3x128xi32>
    %145 = arith.sitofp %144 : vector<3x128xi32> to vector<3x128xf32>
    %146 = arith.addf %143, %145 : vector<3x128xf32>
    %c0_41 = arith.constant 0 : index
    %c0_42 = arith.constant 0 : index
    %147 = vector.load %arg7[%c0_41, %c0_42] : memref<3x128xf32, #tpu.memory_space<vmem>>, vector<3x128xf32>
    tpu.vector_store %arg7[%c0_41, %c0_42], %146 {strides = array<i32>} : memref<3x128xf32, #tpu.memory_space<vmem>>, vector<3x128xf32>,
    %148 = tpu.reciprocal %53 {approx = true} : vector<3x128xf32> -> vector<3x128xf32>
    %149 = arith.mulf %83, %148 : vector<3x128xf32>
    %cst_43 = arith.constant 1.000000e-16 : f32
    %150 = vector.broadcast %cst_43 : f32 to vector<3x128xf32>
    %151 = arith.addf %150, %149 : vector<3x128xf32>
    %152 = math.log %151 : vector<3x128xf32>
    %153 = tpu.reciprocal %55 {approx = true} : vector<3x128xf32> -> vector<3x128xf32>
    %154 = arith.mulf %85, %153 : vector<3x128xf32>
    %cst_44 = arith.constant 1.000000e-16 : f32
    %155 = vector.broadcast %cst_44 : f32 to vector<3x128xf32>
    %156 = arith.addf %155, %154 : vector<3x128xf32>
    %157 = math.log %156 : vector<3x128xf32>
    %158 = arith.subf %62, %79 : vector<3x128xf32>
    %159 = arith.mulf %158, %158 : vector<3x128xf32>
    %160 = arith.subf %69, %81 : vector<3x128xf32>
    %161 = arith.mulf %160, %160 : vector<3x128xf32>
    %162 = arith.addf %159, %161 : vector<3x128xf32>
    %163 = vector.extract_strided_slice %3 {offsets = [3, 0, 0], sizes = [1, 3, 128], strides = [1, 1, 1]} : vector<9x3x128xf32> to vector<1x3x128xf32>
    %164 = vector.shape_cast %163 : vector<1x3x128xf32> to vector<3x128xf32>
    %165 = arith.subf %164, %152 : vector<3x128xf32>
    %166 = arith.mulf %165, %165 : vector<3x128xf32>
    %167 = arith.addf %162, %166 : vector<3x128xf32>
    %168 = vector.extract_strided_slice %3 {offsets = [4, 0, 0], sizes = [1, 3, 128], strides = [1, 1, 1]} : vector<9x3x128xf32> to vector<1x3x128xf32>
    %169 = vector.shape_cast %168 : vector<1x3x128xf32> to vector<3x128xf32>
    %170 = arith.subf %169, %157 : vector<3x128xf32>
    %171 = arith.mulf %170, %170 : vector<3x128xf32>
    %172 = arith.addf %167, %171 : vector<3x128xf32>
    %c0_45 = arith.constant 0 : index
    %c0_46 = arith.constant 0 : index
    %173 = vector.load %arg8[%c0_45, %c0_46] : memref<3x128xf32, #tpu.memory_space<vmem>>, vector<3x128xf32>
    %cst_47 = arith.constant 0.000000e+00 : f32
    %174 = vector.broadcast %cst_47 : f32 to vector<3x128xf32>
    %175 = arith.select %19, %172, %174 : vector<3x128xi1>, vector<3x128xf32>
    %176 = arith.addf %173, %175 : vector<3x128xf32>
    %c0_48 = arith.constant 0 : index
    %c0_49 = arith.constant 0 : index
    %177 = vector.load %arg8[%c0_48, %c0_49] : memref<3x128xf32, #tpu.memory_space<vmem>>, vector<3x128xf32>
    tpu.vector_store %arg8[%c0_48, %c0_49], %176 {strides = array<i32>} : memref<3x128xf32, #tpu.memory_space<vmem>>, vector<3x128xf32>,
    %178 = vector.extract_strided_slice %3 {offsets = [5, 0, 0], sizes = [4, 3, 128], strides = [1, 1, 1]} : vector<9x3x128xf32> to vector<4x3x128xf32>
    %cst_50 = arith.constant dense<0xFF800000> : vector<3x128xf32>
    %179 = vector.multi_reduction <maximumf>, %178, %cst_50 [0] : vector<4x3x128xf32> to vector<3x128xf32>
    %180 = vector.shape_cast %179 : vector<3x128xf32> to vector<1x3x128xf32>
    %181 = vector.broadcast %180 : vector<1x3x128xf32> to vector<4x3x128xf32>
    %182 = arith.subf %178, %181 : vector<4x3x128xf32>
    %183 = math.exp %182 : vector<4x3x128xf32>
    %cst_51 = arith.constant dense<0.000000e+00> : vector<3x128xf32>
    %184 = vector.multi_reduction <add>, %183, %cst_51 [0] : vector<4x3x128xf32> to vector<3x128xf32>
    %185 = math.log %184 : vector<3x128xf32>
    %186 = arith.addf %179, %185 : vector<3x128xf32>
    %187 = vector.extract_strided_slice %4 {offsets = [5, 0, 0], sizes = [1, 3, 128], strides = [1, 1, 1]} : vector<8x3x128xf32> to vector<1x3x128xf32>
    %188 = vector.shape_cast %187 : vector<1x3x128xf32> to vector<3x128xf32>
    %189 = arith.fptosi %188 : vector<3x128xf32> to vector<3x128xi32>
    %190 = tpu.iota {dimensions = array<i32: 0>} : vector<4x3x128xi32>
    %191 = vector.shape_cast %189 : vector<3x128xi32> to vector<1x3x128xi32>
    %192 = vector.broadcast %191 : vector<1x3x128xi32> to vector<4x3x128xi32>
    %193 = arith.cmpi eq, %190, %192 : vector<4x3x128xi32>
    %cst_52 = arith.constant 0.000000e+00 : f32
    %194 = vector.broadcast %cst_52 : f32 to vector<4x3x128xf32>
    %195 = arith.select %193, %178, %194 : vector<4x3x128xi1>, vector<4x3x128xf32>
    %cst_53 = arith.constant dense<0.000000e+00> : vector<3x128xf32>
    %196 = vector.multi_reduction <add>, %195, %cst_53 [0] : vector<4x3x128xf32> to vector<3x128xf32>
    %c0_54 = arith.constant 0 : index
    %c0_55 = arith.constant 0 : index
    %197 = vector.load %arg9[%c0_54, %c0_55] : memref<3x128xf32, #tpu.memory_space<vmem>>, vector<3x128xf32>
    %198 = arith.subf %186, %196 : vector<3x128xf32>
    %cst_56 = arith.constant 0.000000e+00 : f32
    %199 = vector.broadcast %cst_56 : f32 to vector<3x128xf32>
    %200 = arith.select %19, %198, %199 : vector<3x128xi1>, vector<3x128xf32>
    %201 = arith.addf %197, %200 : vector<3x128xf32>
    %c0_57 = arith.constant 0 : index
    %c0_58 = arith.constant 0 : index
    %202 = vector.load %arg9[%c0_57, %c0_58] : memref<3x128xf32, #tpu.memory_space<vmem>>, vector<3x128xf32>
    tpu.vector_store %arg9[%c0_57, %c0_58], %201 {strides = array<i32>} : memref<3x128xf32, #tpu.memory_space<vmem>>, vector<3x128xf32>,
    %c0_i32_59 = arith.constant 0 : i32
    %203 = arith.cmpi eq, %arg0, %c0_i32_59 : i32
    %204 = arith.extui %203 : i1 to i32
    %c0_i32_60 = arith.constant 0 : i32
    %205 = arith.cmpi ne, %204, %c0_i32_60 : i32
    scf.if %205 {
      %c0_61 = arith.constant 0 : index
      %c0_62 = arith.constant 0 : index
      %206 = vector.load %arg5[%c0_61, %c0_62] : memref<3x128xf32, #tpu.memory_space<vmem>>, vector<3x128xf32>
      %cst_63 = arith.constant dense<0.000000e+00> : vector<3xf32>
      %207 = vector.multi_reduction <add>, %206, %cst_63 [1] : vector<3x128xf32> to vector<3xf32>
      %208 = vector.shape_cast %207 : vector<3xf32> to vector<3x1xf32>
      %cst_64 = arith.constant dense<0.000000e+00> : vector<1xf32>
      %209 = vector.multi_reduction <add>, %208, %cst_64 [0] : vector<3x1xf32> to vector<1xf32>
      %210 = vector.shape_cast %209 : vector<1xf32> to vector<1x1xf32>
      %c0_65 = arith.constant 0 : index
      %c0_66 = arith.constant 0 : index
      %211 = vector.load %arg7[%c0_65, %c0_66] : memref<3x128xf32, #tpu.memory_space<vmem>>, vector<3x128xf32>
      %cst_67 = arith.constant dense<0.000000e+00> : vector<3xf32>
      %212 = vector.multi_reduction <add>, %211, %cst_67 [1] : vector<3x128xf32> to vector<3xf32>
      %213 = vector.shape_cast %212 : vector<3xf32> to vector<3x1xf32>
      %cst_68 = arith.constant dense<0.000000e+00> : vector<1xf32>
      %214 = vector.multi_reduction <add>, %213, %cst_68 [0] : vector<3x1xf32> to vector<1xf32>
      %215 = vector.shape_cast %214 : vector<1xf32> to vector<1x1xf32>
      %c0_69 = arith.constant 0 : index
      %c0_70 = arith.constant 0 : index
      %216 = vector.load %arg4[%c0_69, %c0_70] : memref<3x128xf32, #tpu.memory_space<vmem>>, vector<3x128xf32>
      %cst_71 = arith.constant dense<0.000000e+00> : vector<3xf32>
      %217 = vector.multi_reduction <add>, %216, %cst_71 [1] : vector<3x128xf32> to vector<3xf32>
      %218 = vector.shape_cast %217 : vector<3xf32> to vector<3x1xf32>
      %cst_72 = arith.constant dense<0.000000e+00> : vector<1xf32>
      %219 = vector.multi_reduction <add>, %218, %cst_72 [0] : vector<3x1xf32> to vector<1xf32>
      %220 = vector.shape_cast %219 : vector<1xf32> to vector<1x1xf32>
      %221 = arith.divf %220, %210 : vector<1x1xf32>
      %c0_73 = arith.constant 0 : index
      %c0_74 = arith.constant 0 : index
      %222 = vector.load %arg6[%c0_73, %c0_74] : memref<3x128xf32, #tpu.memory_space<vmem>>, vector<3x128xf32>
      %cst_75 = arith.constant dense<0.000000e+00> : vector<3xf32>
      %223 = vector.multi_reduction <add>, %222, %cst_75 [1] : vector<3x128xf32> to vector<3xf32>
      %224 = vector.shape_cast %223 : vector<3xf32> to vector<3x1xf32>
      %cst_76 = arith.constant dense<0.000000e+00> : vector<1xf32>
      %225 = vector.multi_reduction <add>, %224, %cst_76 [0] : vector<3x1xf32> to vector<1xf32>
      %226 = vector.shape_cast %225 : vector<1xf32> to vector<1x1xf32>
      %227 = arith.divf %226, %215 : vector<1x1xf32>
      %c0_77 = arith.constant 0 : index
      %c0_78 = arith.constant 0 : index
      %228 = vector.load %arg8[%c0_77, %c0_78] : memref<3x128xf32, #tpu.memory_space<vmem>>, vector<3x128xf32>
      %cst_79 = arith.constant dense<0.000000e+00> : vector<3xf32>
      %229 = vector.multi_reduction <add>, %228, %cst_79 [1] : vector<3x128xf32> to vector<3xf32>
      %230 = vector.shape_cast %229 : vector<3xf32> to vector<3x1xf32>
      %cst_80 = arith.constant dense<0.000000e+00> : vector<1xf32>
      %231 = vector.multi_reduction <add>, %230, %cst_80 [0] : vector<3x1xf32> to vector<1xf32>
      %232 = vector.shape_cast %231 : vector<1xf32> to vector<1x1xf32>
      %cst_81 = arith.constant 4.000000e+00 : f32
      %233 = vector.broadcast %cst_81 : f32 to vector<1x1xf32>
      %234 = arith.mulf %233, %215 : vector<1x1xf32>
      %235 = arith.divf %232, %234 : vector<1x1xf32>
      %c0_82 = arith.constant 0 : index
      %c0_83 = arith.constant 0 : index
      %236 = vector.load %arg9[%c0_82, %c0_83] : memref<3x128xf32, #tpu.memory_space<vmem>>, vector<3x128xf32>
      %cst_84 = arith.constant dense<0.000000e+00> : vector<3xf32>
      %237 = vector.multi_reduction <add>, %236, %cst_84 [1] : vector<3x128xf32> to vector<3xf32>
      %238 = vector.shape_cast %237 : vector<3xf32> to vector<3x1xf32>
      %cst_85 = arith.constant dense<0.000000e+00> : vector<1xf32>
      %239 = vector.multi_reduction <add>, %238, %cst_85 [0] : vector<3x1xf32> to vector<1xf32>
      %240 = vector.shape_cast %239 : vector<1xf32> to vector<1x1xf32>
      %241 = arith.divf %240, %215 : vector<1x1xf32>
      %cst_86 = arith.constant 1.000000e+01 : f32
      %242 = vector.broadcast %cst_86 : f32 to vector<1x1xf32>
      %243 = arith.mulf %242, %235 : vector<1x1xf32>
      %cst_87 = arith.constant 1.000000e+00 : f32
      %244 = vector.broadcast %cst_87 : f32 to vector<1x1xf32>
      %245 = arith.mulf %244, %227 : vector<1x1xf32>
      %246 = arith.addf %243, %245 : vector<1x1xf32>
      %cst_88 = arith.constant 1.000000e+01 : f32
      %247 = vector.broadcast %cst_88 : f32 to vector<1x1xf32>
      %248 = arith.mulf %247, %221 : vector<1x1xf32>
      %249 = arith.addf %246, %248 : vector<1x1xf32>
      %cst_89 = arith.constant 1.000000e+00 : f32
      %250 = vector.broadcast %cst_89 : f32 to vector<1x1xf32>
      %251 = arith.mulf %250, %241 : vector<1x1xf32>
      %252 = arith.addf %249, %251 : vector<1x1xf32>
      %c0_90 = arith.constant 0 : index
      %c0_91 = arith.constant 0 : index
      %253 = vector.load %arg3[%c0_90, %c0_91] : memref<1x1xf32, #tpu.memory_space<vmem>>, vector<1x1xf32>
      tpu.vector_store %arg3[%c0_90, %c0_91], %252 {strides = array<i32>} : memref<1x1xf32, #tpu.memory_space<vmem>>, vector<1x1xf32>,
    } else {
    }
    return
  }
  func.func @transform_0(%arg0: i32) -> (i32, i32, i32) {
    %c0_i32 = arith.constant 0 : i32
    %c0_i32_0 = arith.constant 0 : i32
    %c0_i32_1 = arith.constant 0 : i32
    return %c0_i32, %arg0, %c0_i32_0 : i32, i32, i32
  }
  func.func @transform_1(%arg0: i32) -> (i32, i32, i32) {
    %c0_i32 = arith.constant 0 : i32
    %c0_i32_0 = arith.constant 0 : i32
    %c0_i32_1 = arith.constant 0 : i32
    return %c0_i32, %arg0, %c0_i32_0 : i32, i32, i32
  }
  func.func @transform_2(%arg0: i32) -> (i32, i32) {
    %c0_i32 = arith.constant 0 : i32
    %c0_i32_0 = arith.constant 0 : i32
    %c0_i32_1 = arith.constant 0 : i32
    return %c0_i32, %c0_i32_0 : i32, i32
  }
}

</mosaic_0001>

<llo_original>
// kernel: yolo_loss_pallas.1
$region0: #{yolo_loss_pallas.1}
  #allocation0 [shape = 'u32[]', space=smem, size = 0x4, offset = 0x4, fixed_abs, tag = 'smem constant byte address 0x4 - core index']
  #allocation1 [shape = 'u32[144,128]{1,0:T(1,128)}', space=vmem, size = 0x12000, scoped, tag = 'internal scratch']
  #allocation2 [shape = 'f32[3,128]{1,0:T(4,128)}', space=vmem, size = 0x800, scoped, tag = 'scratch operand']
  #allocation3 [shape = 'f32[3,128]{1,0:T(4,128)}', space=vmem, size = 0x800, scoped, tag = 'scratch operand']
  #allocation4 [shape = 'f32[3,128]{1,0:T(4,128)}', space=vmem, size = 0x800, scoped, tag = 'scratch operand']
  #allocation5 [shape = 'f32[3,128]{1,0:T(4,128)}', space=vmem, size = 0x800, scoped, tag = 'scratch operand']
  #allocation6 [shape = 'f32[3,128]{1,0:T(4,128)}', space=vmem, size = 0x800, scoped, tag = 'scratch operand']
  #allocation7 [shape = 'f32[3,128]{1,0:T(4,128)}', space=vmem, size = 0x800, scoped, tag = 'scratch operand']
  %s0 = inlined_call_operand.vmem [shape: f32[9,3,128], index: 0, kind: input, shape index: {}]
  %s1 = inlined_call_operand.vmem [shape: f32[8,3,128], index: 1, kind: input, shape index: {}]
  %s2 = inlined_call_operand.hbm [shape: f32[1,1], index: 2, kind: output, shape index: {}]
  %s3 = sld [smem:[#allocation0]]
  $region26: #{yolo_loss_pallas.1} parent=0
    _
  %s5 = ssub.s32 1, %s3
  %s6 = scalar_select 0, %s5, %s3
  $region1: #{yolo_loss_pallas.1} parent=0
    #allocation8 [shape = 'u8[512]{0}', space=vmem, size = 0x400, scoped, tag = 'output window, operand 0, single buffered']
    #allocation9 [shape = 's32[1]{0}', space=sflag, size = 0x4, scoped, tag = 'scoped memory for yolo_loss_pallas.1']
    %7 = vsyncpa [#allocation9], 0
    // Predicated region
    $region2: #{yolo_loss_pallas.1} parent=1 // pred_check
      _
    $region3: #{yolo_loss_pallas.1} parent=1 // pred_check_branch
      %9 = sbr.rel (0) target = $region5
    $region4: #{yolo_loss_pallas.1} parent=1 // pred_region
      _
    $region5: #{yolo_loss_pallas.1} parent=1 // pred_fallthru
      _
    // Predicated region
    $region6: #{yolo_loss_pallas.1} parent=1 // pred_check
      _
    $region7: #{yolo_loss_pallas.1} parent=1 // pred_check_branch
      %11 = sbr.rel (0) target = $region9
    $region8: #{yolo_loss_pallas.1} parent=1 // pred_region
      _
    $region9: #{yolo_loss_pallas.1} parent=1 // pred_fallthru
      _
    %p12 = scmp.eq.s32.totalorder 0, 0
    // Predicated region
    $region10: #{yolo_loss_pallas.1} parent=1 // pred_check
      %p13 = pneg %p12
    $region11: #{yolo_loss_pallas.1} parent=1 // pred_check_branch
      %15 = sbr.rel (%p13) target = $region13
    $region12: #{yolo_loss_pallas.1} parent=1 // pred_region
      %16 = vst [vmem:[#allocation2] sm:$0x7] 0.0
      %17 = vst [vmem:[#allocation3] sm:$0x7] 0.0
      %18 = vst [vmem:[#allocation4] sm:$0x7] 0.0
      %19 = vst [vmem:[#allocation5] sm:$0x7] 0.0
      %20 = vst [vmem:[#allocation6] sm:$0x7] 0.0
      %21 = vst [vmem:[#allocation7] sm:$0x7] 0.0
    $region13: #{yolo_loss_pallas.1} parent=1 // pred_fallthru
      _
    %v22 = vld [vmem:[%s0] sm:$0x7]
    %v23 = vld [vmem:[%s0 + $0x4] sm:$0x7]
    %v24 = vld [vmem:[%s0 + $0x8] sm:$0x7]
    %v25 = vld [vmem:[%s0 + $0xc] sm:$0x7]
    %v26 = vld [vmem:[%s0 + $0x10] sm:$0x7]
    %v27 = vld [vmem:[%s0 + $0x14] sm:$0x7]
    %v28 = vld [vmem:[%s0 + $0x18] sm:$0x7]
    %v29 = vld [vmem:[%s0 + $0x1c] sm:$0x7]
    %v30 = vld [vmem:[%s0 + $0x20] sm:$0x7]
    %v31 = vld [vmem:[%s1] sm:$0x7]
    %v32 = vld [vmem:[%s1 + $0x4] sm:$0x7]
    %v33 = vld [vmem:[%s1 + $0x8] sm:$0x7]
    %v34 = vld [vmem:[%s1 + $0xc] sm:$0x7]
    %v35 = vld [vmem:[%s1 + $0x10] sm:$0x7]
    %v36 = vld [vmem:[%s1 + $0x14] sm:$0x7]
    %v37 = vld [vmem:[%s1 + $0x18] sm:$0x7]
    %v38 = vld [vmem:[%s1 + $0x1c] sm:$0x7]
    %v39 = vlaneseq
    %v40 = vshrl.u32 %v39, 7
    %v41 = vlaneseq
    %v42 = vand.u32 %v41, 127
    %s43 = smul.u32 0, 384
    %v44 = vmul.u32 %v40, 128
    %v45 = vstv %s43
    %v46 = vadd.s32 %v45, %v44
    %v47 = vadd.s32 %v46, %v42
    %vm48 = vcmp.lt.s32.totalorder %v47, 384
    %vm49 = vcmp.eq.f32.partialorder %v31, 1.0
    %vm50 = vmand %vm49, %vm48
    %vm51 = vcmp.eq.f32.partialorder %v31, 0.0
    %vm52 = vmand %vm51, %vm48
    %v53 = vand.u32 2147483647, %v22
    %v54 = vsub.f32 0.0, %v53
    %v55 = vmul.f32 %v54, 1.442695
    %v56 = vpow.pop %v55
    %v57 = vadd.f32 %v56, 1.0
    %v58 = vrcp.pop %v57
    %vm59 = vcmp.ge.f32.partialorder %v22, 0.0
    %v60 = vmul.f32 %v56, %v58
    %v61 = vsel %vm59, %v58, %v60
    %v62 = vmax.f32 %v22, 0.0
    %v63 = vmul.f32 %v22, %v31
    %v64 = vsub.f32 %v62, %v63
    %v65 = vlog2.pop %v57
    %v66 = vmul.f32 %v65, 0.6931472
    %v67 = vadd.f32 %v64, %v66
    %v68 = vld [vmem:[#allocation2] sm:$0x7]
    %v69 = vsel %vm52, %v67, 0.0
    %v70 = vadd.f32 %v68, %v69
    %71 = vst [vmem:[#allocation2] sm:$0x7] %v70
    %v72 = vld [vmem:[#allocation3] sm:$0x7]
    %v73 = vsel %vm52, 1, 0
    %v74 = vcvt.s32.f32 %v73
    %v75 = vadd.f32 %v72, %v74
    %76 = vst [vmem:[#allocation3] sm:$0x7] %v75
    %v77 = vxor.u32 %v23, 2147483648
    %v78 = vmul.f32 %v77, 1.442695
    %v79 = vpow.pop %v78
    %v80 = vadd.f32 %v79, 1.0
    %v81 = vrcp.pop %v80
    %v82 = vmul.f32 1.0, %v81
    %v83 = vxor.u32 %v24, 2147483648
    %v84 = vmul.f32 %v83, 1.442695
    %v85 = vpow.pop %v84
    %v86 = vadd.f32 %v85, 1.0
    %v87 = vrcp.pop %v86
    %v88 = vmul.f32 1.0, %v87
    %v89 = vmul.f32 %v25, 1.442695
    %v90 = vpow.pop %v89
    %v91 = vmul.f32 %v90, %v37
    %v92 = vmul.f32 %v26, 1.442695
    %v93 = vpow.pop %v92
    %v94 = vmul.f32 %v93, %v38
    %v95 = vmul.f32 %v91, 0.5
    %v96 = vsub.f32 %v82, %v95
    %v97 = vmul.f32 %v94, 0.5
    %v98 = vsub.f32 %v88, %v97
    %v99 = vadd.f32 %v82, %v95
    %v100 = vadd.f32 %v88, %v97
    %v101 = vmul.f32 %v34, 0.5
    %v102 = vsub.f32 %v32, %v101
    %v103 = vmul.f32 %v35, 0.5
    %v104 = vsub.f32 %v33, %v103
    %v105 = vadd.f32 %v32, %v101
    %v106 = vadd.f32 %v33, %v103
    %v107 = vmin.f32 %v99, %v105
    %v108 = vmax.f32 %v96, %v102
    %v109 = vsub.f32 %v107, %v108
    %v110 = vmax.f32 %v109, 0.0
    %v111 = vmin.f32 %v100, %v106
    %v112 = vmax.f32 %v98, %v104
    %v113 = vsub.f32 %v111, %v112
    %v114 = vmax.f32 %v113, 0.0
    %v115 = vmul.f32 %v110, %v114
    %v116 = vsub.f32 %v99, %v96
    %v117 = vsub.f32 %v100, %v98
    %v118 = vmul.f32 %v116, %v117
    %v119 = vand.u32 2147483647, %v118
    %v120 = vsub.f32 %v105, %v102
    %v121 = vsub.f32 %v106, %v104
    %v122 = vmul.f32 %v120, %v121
    %v123 = vand.u32 2147483647, %v122
    %v124 = vadd.f32 %v119, %v123
    %v125 = vsub.f32 %v124, %v115
    %v126 = vadd.f32 %v125, 1e-06
    %v127 = vrcp.pop %v126
    %v128 = vmul.f32 %v115, %v127
    %v129 = vld [vmem:[#allocation4] sm:$0x7]
    %v130 = vmul.f32 %v128, %v31
    %v131 = vsub.f32 %v61, %v130
    %v132 = vmul.f32 %v131, %v131
    %v133 = vsel %vm50, %v132, 0.0
    %v134 = vadd.f32 %v129, %v133
    %135 = vst [vmem:[#allocation4] sm:$0x7] %v134
    %v136 = vld [vmem:[#allocation5] sm:$0x7]
    %v137 = vsel %vm50, 1, 0
    %v138 = vcvt.s32.f32 %v137
    %v139 = vadd.f32 %v136, %v138
    %140 = vst [vmem:[#allocation5] sm:$0x7] %v139
    %v141 = vrcp.pop %v37
    %v142 = vmul.f32 %v34, %v141
    %v143 = vadd.f32 %v142, 1e-16
    %v144 = vlog2.pop %v143
    %v145 = vmul.f32 %v144, 0.6931472
    %v146 = vrcp.pop %v38
    %v147 = vmul.f32 %v35, %v146
    %v148 = vadd.f32 %v147, 1e-16
    %v149 = vlog2.pop %v148
    %v150 = vmul.f32 %v149, 0.6931472
    %v151 = vsub.f32 %v82, %v32
    %v152 = vmul.f32 %v151, %v151
    %v153 = vsub.f32 %v88, %v33
    %v154 = vmul.f32 %v153, %v153
    %v155 = vadd.f32 %v152, %v154
    %v156 = vsub.f32 %v25, %v145
    %v157 = vmul.f32 %v156, %v156
    %v158 = vadd.f32 %v155, %v157
    %v159 = vsub.f32 %v26, %v150
    %v160 = vmul.f32 %v159, %v159
    %v161 = vadd.f32 %v158, %v160
    %v162 = vld [vmem:[#allocation6] sm:$0x7]
    %v163 = vsel %vm50, %v161, 0.0
    %v164 = vadd.f32 %v162, %v163
    %165 = vst [vmem:[#allocation6] sm:$0x7] %v164
    %vm166 = vcmask 1042432
    %v167 = vsel %vm166, %v27, -inf
    %v168 = vsel %vm166, %v28, -inf
    %v169 = vsel %vm166, %v29, -inf
    %v170 = vsel %vm166, %v30, -inf
    %v171 = vmax.f32 %v167, %v168
    %v172 = vmax.f32 %v169, %v170
    %v173 = vmax.f32 %v171, %v172
    %v174 = vsub.f32 %v27, %v173
    %v175 = vsub.f32 %v28, %v173
    %v176 = vsub.f32 %v29, %v173
    %v177 = vsub.f32 %v30, %v173
    %v178 = vmul.f32 %v174, 1.442695
    %v179 = vpow.pop %v178
    %v180 = vmul.f32 %v175, 1.442695
    %v181 = vpow.pop %v180
    %v182 = vmul.f32 %v176, 1.442695
    %v183 = vpow.pop %v182
    %v184 = vmul.f32 %v177, 1.442695
    %v185 = vpow.pop %v184
    %v186 = vsel %vm166, %v179, 0.0
    %v187 = vsel %vm166, %v181, 0.0
    %v188 = vadd.f32 %v186, %v187
    %v189 = vsel %vm166, %v183, 0.0
    %v190 = vadd.f32 %v188, %v189
    %v191 = vsel %vm166, %v185, 0.0
    %v192 = vadd.f32 %v190, %v191
    %v193 = vlog2.pop %v192
    %v194 = vmul.f32 %v193, 0.6931472
    %v195 = vadd.f32 %v173, %v194
    %v196 = vcvt.f32.s32.to.zero.pseudo %v36
    %vm197 = vcmp.eq.s32.totalorder %v196, 0
    %vm198 = vcmp.eq.s32.totalorder %v196, 1
    %vm199 = vcmp.eq.s32.totalorder %v196, 2
    %vm200 = vcmp.eq.s32.totalorder %v196, 3
    %v201 = vsel %vm197, %v27, 0.0
    %v202 = vsel %vm198, %v28, 0.0
    %v203 = vsel %vm199, %v29, 0.0
    %v204 = vsel %vm200, %v30, 0.0
    %v205 = vsel %vm166, %v201, 0.0
    %v206 = vsel %vm166, %v202, 0.0
    %v207 = vadd.f32 %v205, %v206
    %v208 = vsel %vm166, %v203, 0.0
    %v209 = vadd.f32 %v207, %v208
    %v210 = vsel %vm166, %v204, 0.0
    %v211 = vadd.f32 %v209, %v210
    %v212 = vld [vmem:[#allocation7] sm:$0x7]
    %v213 = vsub.f32 %v195, %v211
    %v214 = vsel %vm50, %v213, 0.0
    %v215 = vadd.f32 %v212, %v214
    %216 = vst [vmem:[#allocation7] sm:$0x7] %v215
    // Predicated region
    $region14: #{yolo_loss_pallas.1} parent=1 // pred_check
      %p217 = pneg %p12
    $region15: #{yolo_loss_pallas.1} parent=1 // pred_check_branch
      %219 = sbr.rel (%p217) target = $region17
    $region16: #{yolo_loss_pallas.1} parent=1 // pred_region
      %v220 = vld [vmem:[#allocation3] sm:$0x7]
      %v221 = vsel %vm166, %v220, 0.0
      %222 = vadd.xlane.f32.xlu0 %v221
      %v223 = vpop.xlane.xlu0 %222
      %v224 = vsel %vm166, %v223, 0.0
      %v225 = vrot.slane %v224, 4
      %v226 = vadd.f32 %v224, %v225
      %v227 = vrot.slane %v226, 2
      %v228 = vadd.f32 %v226, %v227
      %v229 = vrot.slane %v228, 1
      %v230 = vadd.f32 %v228, %v229
      %v231 = vld [vmem:[#allocation5] sm:$0x7]
      %v232 = vsel %vm166, %v231, 0.0
      %233 = vadd.xlane.f32.xlu0 %v232
      %v234 = vpop.xlane.xlu0 %233
      %v235 = vsel %vm166, %v234, 0.0
      %v236 = vrot.slane %v235, 4
      %v237 = vadd.f32 %v235, %v236
      %v238 = vrot.slane %v237, 2
      %v239 = vadd.f32 %v237, %v238
      %v240 = vrot.slane %v239, 1
      %v241 = vadd.f32 %v239, %v240
      %v242 = vld [vmem:[#allocation2] sm:$0x7]
      %v243 = vsel %vm166, %v242, 0.0
      %244 = vadd.xlane.f32.xlu0 %v243
      %v245 = vpop.xlane.xlu0 %244
      %v246 = vsel %vm166, %v245, 0.0
      %v247 = vrot.slane %v246, 4
      %v248 = vadd.f32 %v246, %v247
      %v249 = vrot.slane %v248, 2
      %v250 = vadd.f32 %v248, %v249
      %v251 = vrot.slane %v250, 1
      %v252 = vadd.f32 %v250, %v251
      %v253 = vrcp.pop %v230
      %v254 = vmul.f32 %v252, %v253
      %v255 = vld [vmem:[#allocation4] sm:$0x7]
      %v256 = vsel %vm166, %v255, 0.0
      %257 = vadd.xlane.f32.xlu0 %v256
      %v258 = vpop.xlane.xlu0 %257
      %v259 = vsel %vm166, %v258, 0.0
      %v260 = vrot.slane %v259, 4
      %v261 = vadd.f32 %v259, %v260
      %v262 = vrot.slane %v261, 2
      %v263 = vadd.f32 %v261, %v262
      %v264 = vrot.slane %v263, 1
      %v265 = vadd.f32 %v263, %v264
      %v266 = vrcp.pop %v241
      %v267 = vmul.f32 %v265, %v266
      %v268 = vld [vmem:[#allocation6] sm:$0x7]
      %v269 = vsel %vm166, %v268, 0.0
      %270 = vadd.xlane.f32.xlu0 %v269
      %v271 = vpop.xlane.xlu0 %270
      %v272 = vsel %vm166, %v271, 0.0
      %v273 = vrot.slane %v272, 4
      %v274 = vadd.f32 %v272, %v273
      %v275 = vrot.slane %v274, 2
      %v276 = vadd.f32 %v274, %v275
      %v277 = vrot.slane %v276, 1
      %v278 = vadd.f32 %v276, %v277
      %v279 = vmul.f32 %v241, 4.0
      %v280 = vrcp.pop %v279
      %v281 = vmul.f32 %v278, %v280
      %v282 = vld [vmem:[#allocation7] sm:$0x7]
      %v283 = vsel %vm166, %v282, 0.0
      %284 = vadd.xlane.f32.xlu0 %v283
      %v285 = vpop.xlane.xlu0 %284
      %v286 = vsel %vm166, %v285, 0.0
      %v287 = vrot.slane %v286, 4
      %v288 = vadd.f32 %v286, %v287
      %v289 = vrot.slane %v288, 2
      %v290 = vadd.f32 %v288, %v289
      %v291 = vrot.slane %v290, 1
      %v292 = vadd.f32 %v290, %v291
      %v293 = vmul.f32 %v292, %v266
      %v294 = vmul.f32 %v281, 10.0
      %v295 = vadd.f32 %v294, %v267
      %v296 = vmul.f32 %v254, 10.0
      %v297 = vadd.f32 %v295, %v296
      %v298 = vadd.f32 %v297, %v293
      %vm299 = vcmask 0
      %300 = vst.msk [vmem:[#allocation8] sm:$0x1] %vm299, %v298
    $region17: #{yolo_loss_pallas.1} parent=1 // pred_fallthru
      _
    // Predicated region
    $region18: #{yolo_loss_pallas.1} parent=1 // pred_check
      _
    $region19: #{yolo_loss_pallas.1} parent=1 // pred_check_branch
      %302 = sbr.rel (0) target = $region21
    $region20: #{yolo_loss_pallas.1} parent=1 // pred_region
      %s304 = ssub.s32 16, 16
      %305 = vsyncadd [#allocation9], %s304
      %s307 = sshll.u32 [#allocation8], 4
      %s308 = int_to_ptr.vmem [resolvable:$true] %s307
      %310 = dma.vmem_to_hbm [thread:$0]  %s308, 16, %s2, [#allocation9]
    $region21: #{yolo_loss_pallas.1} parent=1 // pred_fallthru
      _
    // Predicated region
    $region22: #{yolo_loss_pallas.1} parent=1 // pred_check
      _
    $region23: #{yolo_loss_pallas.1} parent=1 // pred_check_branch
      %312 = sbr.rel (0) target = $region25
    $region24: #{yolo_loss_pallas.1} parent=1 // pred_region
      %313 = dma.done [#allocation9], 16
    $region25: #{yolo_loss_pallas.1} parent=1 // pred_fallthru
      _
    %314 = vsyncpa [#allocation9], 1

</llo_original>
